<compile_context>
chip_gen: v6e
topology: v6e:2x2x1
jax: 0.10.0
libtpu: 0.0.40
codegen_flags: <defaults>
</compile_context>

<pallas_src>
import jax
import jax.numpy as jnp
from jax.experimental import pallas as pl
from jax.experimental.pallas import tpu as pltpu

LANE = 128
SUBLANE = 8
DEFAULT_BATCH_TILE = 4096  # per-step footprint is tiny at these widths; amortize grid overhead


def _round_up(n, m):
    return ((n + m - 1) // m) * m


def _mlp_kernel(x_ref, w1_ref, b1_ref, w2_ref, b2_ref, o_ref):
    # fc1 -- omega already folded into w1/b1 at param-prep time.
    w1 = w1_ref[...]
    x = x_ref[...].astype(w1.dtype)          # no-op when dtypes already match (f32 default)
    h = jnp.dot(x, w1, preferred_element_type=jnp.float32)
    # Bias add + sine stay in f32 (v5e has no bf16 VPU/EUP path; sin is a VALU polynomial).
    h = jnp.sin(h + b1_ref[...])
    # fc2
    w2 = w2_ref[...]
    out = jnp.dot(h.astype(w2.dtype), w2, preferred_element_type=jnp.float32)
    o_ref[...] = (out + b2_ref[...]).astype(o_ref.dtype)


def prepare_mlp_params(w1, b1, w2, b2, omega=10.0, matmul_dtype=None):
    """One-time parameter transform.

    * Folds omega: sin((x@W1 + b1) * omega) == sin(x@(W1*omega) + b1*omega).
    * Zero-pads the hidden dim to 128 lanes (padded entries are exact zeros and
      contribute nothing) -- output dim is left UNPADDED.
    * Optionally pre-casts W1/W2 to matmul_dtype (e.g. bf16 on v6e/v7x); biases
      stay f32 so the elementwise path is f32.
      NOTE: with omega folded into W1, bf16 rounding of the sin argument is
      amplified (~|arg| ~ omega); validate vs. f32 before enabling bf16.

    w1: [input_size, hidden_size]   (transposed vs. PyTorch fc1.weight)
    b1: [hidden_size]
    w2: [hidden_size, output_size]  (transposed vs. PyTorch fc2.weight)
    b2: [output_size]
    Returns (w1p, b1p, w2p, b2p).
    """
    in_size, hidden = w1.shape
    hidden2, out_size = w2.shape
    assert hidden == hidden2
    hidden_p = _round_up(hidden, LANE)
    w_dtype = jnp.float32 if matmul_dtype is None else matmul_dtype

    w1f = w1.astype(jnp.float32) * omega
    b1f = b1.astype(jnp.float32) * omega

    w1p = jnp.zeros((in_size, hidden_p), w_dtype).at[:, :hidden].set(w1f.astype(w_dtype))
    b1p = jnp.zeros((1, hidden_p), jnp.float32).at[:, :hidden].set(b1f)
    w2p = jnp.zeros((hidden_p, out_size), w_dtype).at[:hidden, :].set(w2.astype(w_dtype))
    b2p = b2.astype(jnp.float32).reshape(1, out_size)
    return w1p, b1p, w2p, b2p


def mlp_forward(x, w1p, b1p, w2p, b2p, *, batch_tile=DEFAULT_BATCH_TILE):
    """Run the fused MLP. Params must come from prepare_mlp_params."""
    B, in_size = x.shape
    assert w1p.shape[0] == in_size
    hidden_p = w1p.shape[1]
    out_size = w2p.shape[1]

    # --- batch tiling --------------------------------------------------------
    batch_tile = max(SUBLANE, _round_up(batch_tile, SUBLANE))
    if B <= batch_tile:
        if B >= 2 * SUBLANE:
            # Guarantee >= 2 grid steps so the "parallel" axis feeds both v7x TCs.
            tb = _round_up(pl.cdiv(B, 2), SUBLANE)
        else:
            tb = B  # block == full batch dim: always layout-legal, single step
    else:
        tb = batch_tile
    grid = (pl.cdiv(B, tb),)
    # No jnp.pad of x: a ragged last block is handled by Pallas (masked stores);
    # garbage rows never appear in the (B, out_size) output.

    itemsize = jnp.dtype(x.dtype).itemsize
    cost = pl.CostEstimate(
        flops=2 * B * (in_size * hidden_p + hidden_p * out_size),
        transcendentals=B * hidden_p,
        bytes_accessed=int(x.size * itemsize + w1p.nbytes + b1p.nbytes + w2p.nbytes
                           + b2p.nbytes + B * out_size * itemsize),
    )

    return pl.pallas_call(
        _mlp_kernel,
        out_shape=jax.ShapeDtypeStruct((B, out_size), x.dtype),
        grid=grid,
        in_specs=[
            pl.BlockSpec((tb, in_size), lambda i: (i, 0)),         # x: batch-tiled
            pl.BlockSpec((in_size, hidden_p), lambda i: (0, 0)),   # W1: resident
            pl.BlockSpec((1, hidden_p), lambda i: (0, 0)),         # b1: resident
            pl.BlockSpec((hidden_p, out_size), lambda i: (0, 0)),  # W2: resident
            pl.BlockSpec((1, out_size), lambda i: (0, 0)),         # b2: resident
        ],
        out_specs=pl.BlockSpec((tb, out_size), lambda i: (i, 0)),  # lane-exact store, no pad
        compiler_params=pltpu.CompilerParams(
            dimension_semantics=("parallel",),     # batch axis shards across v7x's 2 TCs
            vmem_limit_bytes=48 * 1024 * 1024,     # ample headroom even at tb=4096
        ),
        cost_estimate=cost,
    )(x, w1p, b1p, w2p, b2p)


def _reference(x, w1, b1, w2, b2, omega):
    return jnp.sin((x @ w1 + b1) * omega) @ w2 + b2


if __name__ == "__main__":
    # Shapes consistent with MLP(input_size=4, hidden_size=32, output_size=2).
    input_size, hidden_size, output_size = 4, 32, 2
    omega = 10.0

    key = jax.random.PRNGKey(0)
    k_x, k_x2, k_w1, k_b1, k_w2, k_b2 = jax.random.split(key, 6)

    # Deterministic PyTorch-style uniform init, stored transposed ([in, out]).
    bound1 = 1.0 / (input_size ** 0.5)
    w1 = jax.random.uniform(k_w1, (input_size, hidden_size), jnp.float32, -bound1, bound1)
    b1 = jax.random.uniform(k_b1, (hidden_size,), jnp.float32, -bound1, bound1)
    bound2 = 1.0 / (hidden_size ** 0.5)
    w2 = jax.random.uniform(k_w2, (hidden_size, output_size), jnp.float32, -bound2, bound2)
    b2 = jax.random.uniform(k_b2, (output_size,), jnp.float32, -bound2, bound2)

    # One-time param transform (fold omega, pad hidden to 128 lanes with exact zeros).
    w1p, b1p, w2p, b2p = prepare_mlp_params(w1, b1, w2, b2, omega=omega)

    # Case 1: tiny batch (single grid step).
    x_small = jax.random.normal(k_x, (8, input_size), dtype=jnp.float32)
    out_small = jax.block_until_ready(mlp_forward(x_small, w1p, b1p, w2p, b2p))
    ref_small = _reference(x_small, w1, b1, w2, b2, omega)
    assert out_small.shape == (8, output_size)
    assert jnp.allclose(out_small, ref_small, atol=1e-5, rtol=1e-5), "mismatch (batch=8)"

    # Case 2: batch large enough to split across >= 2 grid steps (v7x megacore path).
    x_big = jax.random.normal(k_x2, (64, input_size), dtype=jnp.float32)
    out_big = jax.block_until_ready(mlp_forward(x_big, w1p, b1p, w2p, b2p))
    ref_big = _reference(x_big, w1, b1, w2, b2, omega)
    assert out_big.shape == (64, output_size)
    assert jnp.allclose(out_big, ref_big, atol=1e-5, rtol=1e-5), "mismatch (batch=64)"

    print("KERNEL_OK")
</pallas_src>

<mosaic_0001>
module attributes {stable_mosaic.version = 11 : i64} {
  func.func @_mlp_kernel(%arg0: i32, %arg1: memref<8x4xf32, #tpu.memory_space<vmem>>, %arg2: memref<4x128xf32, #tpu.memory_space<vmem>>, %arg3: memref<1x128xf32, #tpu.memory_space<vmem>>, %arg4: memref<128x2xf32, #tpu.memory_space<vmem>>, %arg5: memref<1x2xf32, #tpu.memory_space<vmem>>, %arg6: memref<8x2xf32, #tpu.memory_space<vmem>>) attributes {dimension_semantics = [#tpu.dimension_semantics<parallel>], iteration_bounds = array<i64: 1>, scalar_prefetch = 0 : i64, scratch_operands = 0 : i64, tpu.core_type = #tpu.core_type<tc>, window_params = [{transform_indices = @transform_0, window_bounds = array<i64: 8, 4>}, {pipeline_mode = #tpu.pipeline_mode<synchronous>, transform_indices = @transform_1, window_bounds = array<i64: 4, 128>}, {pipeline_mode = #tpu.pipeline_mode<synchronous>, transform_indices = @transform_2, window_bounds = array<i64: 1, 128>}, {pipeline_mode = #tpu.pipeline_mode<synchronous>, transform_indices = @transform_3, window_bounds = array<i64: 128, 2>}, {pipeline_mode = #tpu.pipeline_mode<synchronous>, transform_indices = @transform_4, window_bounds = array<i64: 1, 2>}, {transform_indices = @transform_5, window_bounds = array<i64: 8, 2>}]} {
    %c0 = arith.constant 0 : index
    %c0_0 = arith.constant 0 : index
    %0 = vector.load %arg2[%c0, %c0_0] : memref<4x128xf32, #tpu.memory_space<vmem>>, vector<4x128xf32>
    %c0_1 = arith.constant 0 : index
    %c0_2 = arith.constant 0 : index
    %1 = vector.load %arg1[%c0_1, %c0_2] : memref<8x4xf32, #tpu.memory_space<vmem>>, vector<8x4xf32>
    %cst = arith.constant dense<0.000000e+00> : vector<8x128xf32>
    %2 = tpu.matmul %1, %0, %cst {dimension_numbers = #tpu.dot_dimension_numbers<[1], [0], [0], [1], [0, 0, 1, 1], [], []>} : vector<8x4xf32>, vector<4x128xf32>, vector<8x128xf32> -> vector<8x128xf32>
    %c0_3 = arith.constant 0 : index
    %c0_4 = arith.constant 0 : index
    %3 = vector.load %arg3[%c0_3, %c0_4] : memref<1x128xf32, #tpu.memory_space<vmem>>, vector<1x128xf32>
    %4 = vector.broadcast %3 : vector<1x128xf32> to vector<8x128xf32>
    %5 = arith.addf %2, %4 : vector<8x128xf32>
    %6 = math.sin %5 : vector<8x128xf32>
    %c0_5 = arith.constant 0 : index
    %c0_6 = arith.constant 0 : index
    %7 = vector.load %arg4[%c0_5, %c0_6] : memref<128x2xf32, #tpu.memory_space<vmem>>, vector<128x2xf32>
    %cst_7 = arith.constant dense<0.000000e+00> : vector<8x2xf32>
    %8 = tpu.matmul %6, %7, %cst_7 {dimension_numbers = #tpu.dot_dimension_numbers<[1], [0], [0], [1], [0, 0, 1, 1], [], []>} : vector<8x128xf32>, vector<128x2xf32>, vector<8x2xf32> -> vector<8x2xf32>
    %c0_8 = arith.constant 0 : index
    %c0_9 = arith.constant 0 : index
    %9 = vector.load %arg5[%c0_8, %c0_9] : memref<1x2xf32, #tpu.memory_space<vmem>>, vector<1x2xf32>
    %10 = vector.broadcast %9 : vector<1x2xf32> to vector<8x2xf32>
    %11 = arith.addf %8, %10 : vector<8x2xf32>
    %c0_10 = arith.constant 0 : index
    %c0_11 = arith.constant 0 : index
    %12 = vector.load %arg6[%c0_10, %c0_11] : memref<8x2xf32, #tpu.memory_space<vmem>>, vector<8x2xf32>
    tpu.vector_store %arg6[%c0_10, %c0_11], %11 {strides = array<i32>} : memref<8x2xf32, #tpu.memory_space<vmem>>, vector<8x2xf32>,
    return
  }
  func.func @transform_0(%arg0: i32) -> (i32, i32) {
    %c0_i32 = arith.constant 0 : i32
    %c0_i32_0 = arith.constant 0 : i32
    return %arg0, %c0_i32 : i32, i32
  }
  func.func @transform_1(%arg0: i32) -> (i32, i32) {
    %c0_i32 = arith.constant 0 : i32
    %c0_i32_0 = arith.constant 0 : i32
    %c0_i32_1 = arith.constant 0 : i32
    return %c0_i32, %c0_i32_0 : i32, i32
  }
  func.func @transform_2(%arg0: i32) -> (i32, i32) {
    %c0_i32 = arith.constant 0 : i32
    %c0_i32_0 = arith.constant 0 : i32
    %c0_i32_1 = arith.constant 0 : i32
    return %c0_i32, %c0_i32_0 : i32, i32
  }
  func.func @transform_3(%arg0: i32) -> (i32, i32) {
    %c0_i32 = arith.constant 0 : i32
    %c0_i32_0 = arith.constant 0 : i32
    %c0_i32_1 = arith.constant 0 : i32
    return %c0_i32, %c0_i32_0 : i32, i32
  }
  func.func @transform_4(%arg0: i32) -> (i32, i32) {
    %c0_i32 = arith.constant 0 : i32
    %c0_i32_0 = arith.constant 0 : i32
    %c0_i32_1 = arith.constant 0 : i32
    return %c0_i32, %c0_i32_0 : i32, i32
  }
  func.func @transform_5(%arg0: i32) -> (i32, i32) {
    %c0_i32 = arith.constant 0 : i32
    %c0_i32_0 = arith.constant 0 : i32
    return %arg0, %c0_i32 : i32, i32
  }
}

</mosaic_0001>

<llo_original>
// kernel: tpu_custom_call.1
$region0: #{tpu_custom_call.1}
  #allocation0 [shape = 'u32[]', space=smem, size = 0x4, offset = 0x4, fixed_abs, tag = 'smem constant byte address 0x4 - core index']
  #allocation1 [shape = 'u32[144,128]{1,0:T(1,128)}', space=vmem, size = 0x12000, scoped, tag = 'internal scratch']
  %s0 = inlined_call_operand.vmem [shape: f32[8,4], index: 0, kind: input, shape index: {}]
  %s1 = inlined_call_operand.vmem [shape: f32[4,128], index: 1, kind: input, shape index: {}]
  %s2 = inlined_call_operand.vmem [shape: f32[1,128], index: 2, kind: input, shape index: {}]
  %s3 = inlined_call_operand.vmem [shape: f32[128,2], index: 3, kind: input, shape index: {}]
  %s4 = inlined_call_operand.vmem [shape: f32[1,2], index: 4, kind: input, shape index: {}]
  %s5 = inlined_call_operand.vmem [shape: f32[8,2], index: 5, kind: output, shape index: {}]
  %s6 = sld [smem:[#allocation0]]
  $region30: #{tpu_custom_call.1} parent=0
    _
  %s8 = ssub.s32 1, %s6
  %s9 = scalar_select 0, %s8, %s6
  // Predicated region
  $region2: #{tpu_custom_call.1} parent=0 // pred_check
    _
  $region3: #{tpu_custom_call.1} parent=0 // pred_check_branch
    %11 = sbr.rel (0) target = $region5
  $region4: #{tpu_custom_call.1} parent=0 // pred_region
    _
  $region5: #{tpu_custom_call.1} parent=0 // pred_fallthru
    _
  // Predicated region
  $region6: #{tpu_custom_call.1} parent=0 // pred_check
    _
  $region7: #{tpu_custom_call.1} parent=0 // pred_check_branch
    %13 = sbr.rel (0) target = $region9
  $region8: #{tpu_custom_call.1} parent=0 // pred_region
    _
  $region9: #{tpu_custom_call.1} parent=0 // pred_fallthru
    _
  // Predicated region
  $region10: #{tpu_custom_call.1} parent=0 // pred_check
    _
  $region11: #{tpu_custom_call.1} parent=0 // pred_check_branch
    %15 = sbr.rel (0) target = $region13
  $region12: #{tpu_custom_call.1} parent=0 // pred_region
    _
  $region13: #{tpu_custom_call.1} parent=0 // pred_fallthru
    _
  // Predicated region
  $region14: #{tpu_custom_call.1} parent=0 // pred_check
    _
  $region15: #{tpu_custom_call.1} parent=0 // pred_check_branch
    %17 = sbr.rel (0) target = $region17
  $region16: #{tpu_custom_call.1} parent=0 // pred_region
    _
  $region17: #{tpu_custom_call.1} parent=0 // pred_fallthru
    _
  // Predicated region
  $region18: #{tpu_custom_call.1} parent=0 // pred_check
    _
  $region19: #{tpu_custom_call.1} parent=0 // pred_check_branch
    %19 = sbr.rel (0) target = $region21
  $region20: #{tpu_custom_call.1} parent=0 // pred_region
    _
  $region21: #{tpu_custom_call.1} parent=0 // pred_fallthru
    _
  %v20 = vld [vmem:[%s1] sm:$0xf]
  %v21 = vld [vmem:[%s0] sm:$0xff]
  %v22 = vld [vmem:[%s2] sm:$0x1]
  %v24 = vlaneseq
  %v25 = vshrl.u32 %v24, 7
  %v26 = vsub.s32 0, %v25
  %v27 = vrot.slane %v22, %v26
  %vm29 = vcmask 31744
  %v31 = vsel %vm29, %v21, 0
  %vm33 = vcmask 1043456
  %v35 = vsel %vm33, %v20, 0
  %37 = vmatprep.subr.mxu0 0.0
  %38 = vmatpush1.msra.mxu0 0.0
  %39 = vmatprep.subr.mxu0 0.0
  %40 = vmatpush1.msra.mxu0 0.0
  %41 = vmatprep.subr.mxu0 0.0
  %42 = vmatpush1.msra.mxu0 0.0
  %43 = vmatprep.subr.mxu0 0.0
  %44 = vmatpush1.msra.mxu0 0.0
  %45 = vmatprep.subr.mxu0 0.0
  %46 = vmatpush1.msra.mxu0 0.0
  %47 = vmatprep.subr.mxu0 0.0
  %48 = vmatpush1.msra.mxu0 0.0
  %49 = vmatprep.subr.mxu0 0.0
  %50 = vmatpush1.msra.mxu0 0.0
  %51 = vmatprep.subr.mxu0 0.0
  %52 = vmatpush1.msra.mxu0 0.0
  %53 = vmatprep.subr.mxu0 0.0
  %54 = vmatpush1.msra.mxu0 0.0
  %55 = vmatprep.subr.mxu0 0.0
  %56 = vmatpush1.msra.mxu0 0.0
  %57 = vmatprep.subr.mxu0 0.0
  %58 = vmatpush1.msra.mxu0 0.0
  %59 = vmatprep.subr.mxu0 0.0
  %60 = vmatpush1.msra.mxu0 0.0
  %61 = vmatprep.subr.mxu0 0.0
  %62 = vmatpush1.msra.mxu0 0.0
  %63 = vmatprep.subr.mxu0 0.0
  %64 = vmatpush1.msra.mxu0 0.0
  %65 = vmatprep.subr.mxu0 0.0
  %66 = vmatpush1.msra.mxu0 0.0
  %67 = vmatprep.subr.mxu0 0.0
  %68 = vmatpush1.msra.mxu0 %v35
  %69 = vmatprep.subr.mxu0 0.0
  %70 = vmatpush2.msra.mxu0 0.0
  %71 = vmatprep.subr.mxu0 0.0
  %72 = vmatpush2.msra.mxu0 0.0
  %73 = vmatprep.subr.mxu0 0.0
  %74 = vmatpush2.msra.mxu0 0.0
  %75 = vmatprep.subr.mxu0 0.0
  %76 = vmatpush2.msra.mxu0 0.0
  %77 = vmatprep.subr.mxu0 0.0
  %78 = vmatpush2.msra.mxu0 0.0
  %79 = vmatprep.subr.mxu0 0.0
  %80 = vmatpush2.msra.mxu0 0.0
  %81 = vmatprep.subr.mxu0 0.0
  %82 = vmatpush2.msra.mxu0 0.0
  %83 = vmatprep.subr.mxu0 0.0
  %84 = vmatpush2.msra.mxu0 0.0
  %85 = vmatprep.subr.mxu0 0.0
  %86 = vmatpush2.msra.mxu0 0.0
  %87 = vmatprep.subr.mxu0 0.0
  %88 = vmatpush2.msra.mxu0 0.0
  %89 = vmatprep.subr.mxu0 0.0
  %90 = vmatpush2.msra.mxu0 0.0
  %91 = vmatprep.subr.mxu0 0.0
  %92 = vmatpush2.msra.mxu0 0.0
  %93 = vmatprep.subr.mxu0 0.0
  %94 = vmatpush2.msra.mxu0 0.0
  %95 = vmatprep.subr.mxu0 0.0
  %96 = vmatpush2.msra.mxu0 0.0
  %97 = vmatprep.subr.mxu0 0.0
  %98 = vmatpush2.msra.mxu0 0.0
  %99 = vmatprep.subr.mxu0 0.0
  %100 = vmatpush2.msra.mxu0 0.0
  %101 = vmatprep.mubr.f32.mxu0 0.0
  %102 = vmatmul.mubr.f32.gmra.mxu0 %v31
  %v103 = vpop.f32.mrf.mxu0
  %v104 = vadd.f32 %v27, %v103
  %v105 = vpop.f32.mrf.mxu0
  %106 = vdwg.mxu0
  %v107 = vand.u32 2147483647, %v104
  %vm108 = vcmp.le.f32.partialorder %v107, 0.7853982
  %vm109 = vcmp.lt.s32.totalorder %v104, 0
  %v110 = vand.u32 %v104, 2139095040
  %v111 = vshrl.u32 %v110, 23
  %v112 = vsub.s32 %v111, 127
  %v113 = vand.u32 2147483647, %v104
  %v114 = vand.u32 %v113, 8388607
  %v115 = vor.u32 %v114, 8388608
  %v116 = vsub.s32 0, %v115
  %v117 = vadd.s32 %v112, 1
  %vm118 = vcmp.gt.s32.totalorder %v117, 0
  %v119 = vsel %vm118, %v117, 0
  %v120 = vshrl.u32 %v119, 5
  %v121 = vand.u32 %v119, 31
  %v122 = vsub.s32 32, %v121
  %v123 = vshrl.u32 683565275, %v122
  %v124 = vshll.u32 683565275, %v121
  %v125 = vshrl.u32 2475754826, %v122
  %v126 = vor.u32 %v124, %v125
  %v127 = vshll.u32 2475754826, %v121
  %v128 = vshrl.u32 2131351028, %v122
  %v129 = vor.u32 %v127, %v128
  %v130 = vshll.u32 2131351028, %v121
  %v131 = vshrl.u32 2102212464, %v122
  %v132 = vor.u32 %v130, %v131
  %v133 = vshll.u32 2102212464, %v121
  %v134 = vshrl.u32 920167782, %v122
  %v135 = vor.u32 %v133, %v134
  %v136 = vshll.u32 920167782, %v121
  %v137 = vshrl.u32 1326507024, %v122
  %v138 = vor.u32 %v136, %v137
  %vm139 = vcmp.lt.s32.totalorder %v120, 1
  %vm140 = vcmp.lt.s32.totalorder %v120, 2
  %vm141 = vcmp.lt.s32.totalorder %v120, 3
  %vm142 = vcmp.lt.s32.totalorder %v120, 4
  %v143 = vsel %vm139, %v123, %v126
  %v144 = vsel %vm142, %v132, 2102212464
  %v145 = vsel %vm141, %v129, %v144
  %v146 = vsel %vm140, %v143, %v145
  %v147 = vsel %vm139, %v126, %v129
  %v148 = vsel %vm142, %v135, 920167782
  %v149 = vsel %vm141, %v132, %v148
  %v150 = vsel %vm140, %v147, %v149
  %v151 = vsel %vm139, %v129, %v132
  %v152 = vsel %vm142, %v138, 1326507024
  %v153 = vsel %vm141, %v135, %v152
  %v154 = vsel %vm140, %v151, %v153
  %v155 = vshll.u32 %v115, 8
  %v156 = vmul.u32.u64.compose %v155, %v154
  %v157 = vextract.low.u32 %v156
  %v158 = vextract.high.u32 %v156
  %v159 = vmul.u32.u64.compose %v155, %v150
  %v160 = vextract.low.u32 %v159
  %v161 = vextract.high.u32 %v159
  %v162 = vmul.u32 %v155, %v146
  %v163 = vadd.s32 %v158, %v160
  %vm164 = vc.u32 %v158, %v160
  %v165 = vadd.s32 %v161, 1
  %v166 = vsel %vm164, %v165, %v161
  %v167 = vadd.s32 %v162, %v166
  %v168 = vadd.s32 %v167, 536870912
  %v169 = vshrl.u32 %v168, 30
  %v170 = vshll.u32 %v169, 30
  %v171 = vsub.s32 %v167, %v170
  %vm172 = vcmp.lt.s32.totalorder %v171, 0
  %v173 = vsub.s32 0, %v171
  %v174 = vsel %vm172, %v173, %v171
  %v175 = vclz %v174
  %v176 = vsub.s32 %v175, 2
  %vm177 = vcmp.gt.s32.totalorder 0, %v176
  %v178 = vsel %vm177, 0, %v176
  %v179 = vsub.s32 32, %v178
  %v180 = vshll.u32 %v171, %v178
  %v181 = vshrl.u32 %v163, %v179
  %v182 = vor.u32 %v180, %v181
  %v183 = vsub.s32 4294967266, %v178
  %v184 = vadd.s32 %v183, 127
  %v185 = vshll.u32 %v184, 23
  %v186 = vor.u32 4788187, %v185
  %v187 = vand.u32 2147483647, %v186
  %v189 = vcvt.s32.f32 %v182
  %v190 = vmul.f32 %v189, %v187
  %v191 = vxor.u32 %v190, 2147483648
  %v192 = vsel %vm109, %v191, %v190
  %v193 = vsub.s32 4, %v169
  %v194 = vsel %vm109, %v193, %v169
  %v195 = vsel %vm108, %v104, %v192
  %v196 = vsel %vm108, 0, %v194
  %v197 = vcosq.f32.pop %v195
  %v198 = vsinq.f32.pop %v195
  %vm199 = vweird.f32 %v104
  %v200 = vadd.s32 %v196, 3
  %v201 = vand.u32 %v200, 3
  %vm202 = vcmp.lt.s32.totalorder %v201, 2
  %vm203 = vcmp.eq.s32.totalorder %v201, 0
  %v204 = vxor.u32 %v198, 2147483648
  %v205 = vsel %vm203, %v197, %v204
  %vm206 = vcmp.eq.s32.totalorder %v201, 2
  %v207 = vxor.u32 %v197, 2147483648
  %v208 = vsel %vm206, %v207, %v198
  %v209 = vsel %vm202, %v205, %v208
  %v210 = vsel %vm199, nan, %v209
  %v211 = vld [vmem:[%s3] sm:$0xff]
  %v212 = vld [vmem:[%s3 + $0x8] sm:$0xff]
  %v213 = vld [vmem:[%s3 + $0x10] sm:$0xff]
  %v214 = vld [vmem:[%s3 + $0x18] sm:$0xff]
  %v215 = vld [vmem:[%s3 + $0x20] sm:$0xff]
  %v216 = vld [vmem:[%s3 + $0x28] sm:$0xff]
  %v217 = vld [vmem:[%s3 + $0x30] sm:$0xff]
  %v218 = vld [vmem:[%s3 + $0x38] sm:$0xff]
  %v219 = vld [vmem:[%s3 + $0x40] sm:$0xff]
  %v220 = vld [vmem:[%s3 + $0x48] sm:$0xff]
  %v221 = vld [vmem:[%s3 + $0x50] sm:$0xff]
  %v222 = vld [vmem:[%s3 + $0x58] sm:$0xff]
  %v223 = vld [vmem:[%s3 + $0x60] sm:$0xff]
  %v224 = vld [vmem:[%s3 + $0x68] sm:$0xff]
  %v225 = vld [vmem:[%s3 + $0x70] sm:$0xff]
  %v226 = vld [vmem:[%s3 + $0x78] sm:$0xff]
  %v227 = vld [vmem:[%s4] sm:$0x1]
  %v229 = vlaneseq
  %v230 = vshrl.u32 %v229, 7
  %v231 = vsub.s32 0, %v230
  %v232 = vrot.slane %v227, %v231
  %234 = vmatprep.subr.mxu0 0.0
  %235 = vmatpush1.msra.mxu0 %v226
  %236 = vmatprep.subr.mxu0 0.0
  %237 = vmatpush1.msra.mxu0 %v225
  %238 = vmatprep.subr.mxu0 0.0
  %239 = vmatpush1.msra.mxu0 %v224
  %240 = vmatprep.subr.mxu0 0.0
  %241 = vmatpush1.msra.mxu0 %v223
  %242 = vmatprep.subr.mxu0 0.0
  %243 = vmatpush1.msra.mxu0 %v222
  %244 = vmatprep.subr.mxu0 0.0
  %245 = vmatpush1.msra.mxu0 %v221
  %246 = vmatprep.subr.mxu0 0.0
  %247 = vmatpush1.msra.mxu0 %v220
  %248 = vmatprep.subr.mxu0 0.0
  %249 = vmatpush1.msra.mxu0 %v219
  %250 = vmatprep.subr.mxu0 0.0
  %251 = vmatpush1.msra.mxu0 %v218
  %252 = vmatprep.subr.mxu0 0.0
  %253 = vmatpush1.msra.mxu0 %v217
  %254 = vmatprep.subr.mxu0 0.0
  %255 = vmatpush1.msra.mxu0 %v216
  %256 = vmatprep.subr.mxu0 0.0
  %257 = vmatpush1.msra.mxu0 %v215
  %258 = vmatprep.subr.mxu0 0.0
  %259 = vmatpush1.msra.mxu0 %v214
  %260 = vmatprep.subr.mxu0 0.0
  %261 = vmatpush1.msra.mxu0 %v213
  %262 = vmatprep.subr.mxu0 0.0
  %263 = vmatpush1.msra.mxu0 %v212
  %264 = vmatprep.subr.mxu0 0.0
  %265 = vmatpush1.msra.mxu0 %v211
  %266 = vmatprep.subr.mxu0 0.0
  %267 = vmatpush2.msra.mxu0 0.0
  %268 = vmatprep.subr.mxu0 0.0
  %269 = vmatpush2.msra.mxu0 0.0
  %270 = vmatprep.subr.mxu0 0.0
  %271 = vmatpush2.msra.mxu0 0.0
  %272 = vmatprep.subr.mxu0 0.0
  %273 = vmatpush2.msra.mxu0 0.0
  %274 = vmatprep.subr.mxu0 0.0
  %275 = vmatpush2.msra.mxu0 0.0
  %276 = vmatprep.subr.mxu0 0.0
  %277 = vmatpush2.msra.mxu0 0.0
  %278 = vmatprep.subr.mxu0 0.0
  %279 = vmatpush2.msra.mxu0 0.0
  %280 = vmatprep.subr.mxu0 0.0
  %281 = vmatpush2.msra.mxu0 0.0
  %282 = vmatprep.subr.mxu0 0.0
  %283 = vmatpush2.msra.mxu0 0.0
  %284 = vmatprep.subr.mxu0 0.0
  %285 = vmatpush2.msra.mxu0 0.0
  %286 = vmatprep.subr.mxu0 0.0
  %287 = vmatpush2.msra.mxu0 0.0
  %288 = vmatprep.subr.mxu0 0.0
  %289 = vmatpush2.msra.mxu0 0.0
  %290 = vmatprep.subr.mxu0 0.0
  %291 = vmatpush2.msra.mxu0 0.0
  %292 = vmatprep.subr.mxu0 0.0
  %293 = vmatpush2.msra.mxu0 0.0
  %294 = vmatprep.subr.mxu0 0.0
  %295 = vmatpush2.msra.mxu0 0.0
  %296 = vmatprep.subr.mxu0 0.0
  %297 = vmatpush2.msra.mxu0 0.0
  %298 = vmatprep.mubr.f32.mxu0 0.0
  %299 = vmatmul.mubr.f32.gmra.mxu0 %v210
  %v300 = vpop.f32.mrf.mxu0
  %v301 = vadd.f32 %v232, %v300
  %v302 = vpop.f32.mrf.mxu0
  %303 = vdwg.mxu0
  %vm304 = vcmask 15360
  %305 = vst.msk [vmem:[%s5] sm:$0xff] %vm304, %v301
  // Predicated region
  $region22: #{tpu_custom_call.1} parent=0 // pred_check
    _
  $region23: #{tpu_custom_call.1} parent=0 // pred_check_branch
    %307 = sbr.rel (0) target = $region25
  $region24: #{tpu_custom_call.1} parent=0 // pred_region
    _
  $region25: #{tpu_custom_call.1} parent=0 // pred_fallthru
    _
  // Predicated region
  $region26: #{tpu_custom_call.1} parent=0 // pred_check
    _
  $region27: #{tpu_custom_call.1} parent=0 // pred_check_branch
    %309 = sbr.rel (0) target = $region29
  $region28: #{tpu_custom_call.1} parent=0 // pred_region
    _
  $region29: #{tpu_custom_call.1} parent=0 // pred_fallthru
    _

</llo_original>
